<compile_context>
chip_gen: v6e
topology: v6e:2x2x1
jax: 0.10.0
libtpu: 0.0.40
codegen_flags: <defaults>
</compile_context>

<pallas_src>
import functools
import math

import jax
import jax.numpy as jnp
from jax.experimental import pallas as pl
from jax.experimental.pallas import tpu as pltpu

LANES = 128
SUBLANES = 8
TILE_ROWS_MAX = 2048  # 2048 x 128 x 4B = 1 MiB per f32 tile (x2 for double-buffering)


def _hw_prng_noise_kernel(seed_ref, o_ref, *, std, mu):
    # Per-tile seed: mix the grid index into the seed so every tile (and each
    # TensorCore under megacore sharding) emits a distinct stream.
    pltpu.prng_seed(seed_ref[0], pl.program_id(0))
    noise = pltpu.stateful_normal(o_ref.shape, jnp.float32)
    # Single VPU FMA in f32; cast only at the store boundary (v5e-friendly).
    o_ref[...] = (noise * std + mu).astype(o_ref.dtype)


def _affine_noise_kernel(n_ref, o_ref, *, std, mu):
    # Portable fallback: standard normal generated outside, affine fused here.
    o_ref[...] = (n_ref[...].astype(jnp.float32) * std + mu).astype(o_ref.dtype)


def _layout(total):
    """Flat element count -> (padded rows, rows per tile) of a (rows,128) slab."""
    rows = -(-total // LANES)                    # ceil to full 128-lane rows
    rows = -(-rows // SUBLANES) * SUBLANES       # (8,128) alignment
    tile_r = min(rows, TILE_ROWS_MAX)            # small inputs: one grid point
    rows = -(-rows // tile_r) * tile_r           # large inputs: whole tiles
    return rows, tile_r


def gaussian_noiser_forward(x, seed, *, std: float = 1.0, mu: float = 0.0):
    """Pallas implementation of GaussianNoiser.forward(x)."""
    if std < 0:
        raise ValueError(f"Standard deviation must be greater than 0 not {std}")

    total = math.prod(x.shape)
    rows, tile_r = _layout(total)
    n_tiles = rows // tile_r
    out_dtype = jnp.dtype(x.dtype)
    out_shape = jax.ShapeDtypeStruct((rows, LANES), out_dtype)
    compiler_params = pltpu.CompilerParams(dimension_semantics=("parallel",))

    if jax.default_backend() == "tpu":
        # On-chip hardware PRNG: no HBM input traffic at all, only the writeback.
        kernel = functools.partial(_hw_prng_noise_kernel, std=float(std), mu=float(mu))
        noise2d = pl.pallas_call(
            kernel,
            out_shape=out_shape,
            grid_spec=pltpu.PrefetchScalarGridSpec(
                num_scalar_prefetch=1,                 # seed lives in SMEM
                grid=(n_tiles,),
                in_specs=[],                           # x is never read
                out_specs=pl.BlockSpec((tile_r, LANES), lambda i, seed: (i, 0)),
            ),
            compiler_params=compiler_params,
            cost_estimate=pl.CostEstimate(
                flops=2 * rows * LANES,
                transcendentals=3 * rows * LANES,      # ~log/sqrt/trig per normal
                bytes_accessed=rows * LANES * out_dtype.itemsize,
            ),
        )(seed)
    else:
        # TODO(synk): pltpu.prng_seed/stateful_normal have no CPU/interpret
        # lowering; fall back to XLA RNG for the standard normals and fuse only
        # the scale/shift + cast in the (still tiled) Pallas kernel.
        key = jax.random.PRNGKey(jnp.asarray(seed).reshape(-1)[0])
        base = jax.random.normal(key, (rows, LANES), dtype=jnp.float32)
        kernel = functools.partial(_affine_noise_kernel, std=float(std), mu=float(mu))
        noise2d = pl.pallas_call(
            kernel,
            out_shape=out_shape,
            grid=(n_tiles,),
            in_specs=[pl.BlockSpec((tile_r, LANES), lambda i: (i, 0))],
            out_specs=pl.BlockSpec((tile_r, LANES), lambda i: (i, 0)),
            compiler_params=compiler_params,
            cost_estimate=pl.CostEstimate(
                flops=2 * rows * LANES,
                transcendentals=0,
                bytes_accessed=rows * LANES * (4 + out_dtype.itemsize),
            ),
        )(base)

    if rows * LANES == total:
        # Already exactly the caller's element count: free reshape, no extra pass.
        return noise2d.reshape(x.shape)
    # Padding was added: slice off the tail (layout plumbing only).
    return noise2d.reshape(-1)[:total].reshape(x.shape)


if __name__ == "__main__":
    STD = 2.0
    MU = 3.0

    key = jax.random.PRNGKey(0)
    k_x, k_seed = jax.random.split(key)

    # GaussianNoiser only uses x's shape/dtype; its values are irrelevant.
    x = jax.random.normal(k_x, (2, 4, 16, 16), dtype=jnp.float32)
    seed = jax.random.randint(k_seed, (1,), 0, jnp.iinfo(jnp.int32).max,
                              dtype=jnp.int32)

    y = jax.block_until_ready(gaussian_noiser_forward(x, seed, std=STD, mu=MU))

    # Shape/dtype follow x, values are finite.
    assert y.shape == x.shape and y.dtype == x.dtype
    assert bool(jnp.all(jnp.isfinite(y)))

    # Statistical sanity: moments of N(mu, std^2) over 2048 samples.
    # (The PRNG stream cannot bit-match torch.randn, so the check is
    #  statistical + determinism, not bit equality.)
    mean = float(jnp.mean(y))
    stddev = float(jnp.std(y))
    assert abs(mean - MU) < 0.3, (mean, MU)
    assert abs(stddev - STD) < 0.3, (stddev, STD)

    # Determinism: same seed -> identical noise.
    y2 = jax.block_until_ready(gaussian_noiser_forward(x, seed, std=STD, mu=MU))
    assert bool(jnp.array_equal(y, y2))

    # Also exercise the padded / non-aligned path (slicing branch) cheaply.
    x_odd = jnp.zeros((3, 5, 7), dtype=jnp.bfloat16)
    y3 = jax.block_until_ready(gaussian_noiser_forward(x_odd, seed, std=1.0, mu=0.0))
    assert y3.shape == x_odd.shape and y3.dtype == x_odd.dtype

    print("KERNEL_OK")
</pallas_src>

<mosaic_0001>
module attributes {stable_mosaic.version = 11 : i64} {
  func.func @_affine_noise_kernel(%arg0: i32, %arg1: memref<16x128xf32, #tpu.memory_space<vmem>>, %arg2: memref<16x128xf32, #tpu.memory_space<vmem>>) attributes {dimension_semantics = [#tpu.dimension_semantics<parallel>], iteration_bounds = array<i64: 1>, scalar_prefetch = 0 : i64, scratch_operands = 0 : i64, tpu.core_type = #tpu.core_type<tc>, window_params = [{transform_indices = @transform_0, window_bounds = array<i64: 16, 128>}, {transform_indices = @transform_1, window_bounds = array<i64: 16, 128>}]} {
    %c0 = arith.constant 0 : index
    %c0_0 = arith.constant 0 : index
    %0 = vector.load %arg1[%c0, %c0_0] : memref<16x128xf32, #tpu.memory_space<vmem>>, vector<16x128xf32>
    %cst = arith.constant 2.000000e+00 : f32
    %1 = vector.broadcast %cst : f32 to vector<16x128xf32>
    %2 = arith.mulf %0, %1 : vector<16x128xf32>
    %cst_1 = arith.constant 3.000000e+00 : f32
    %3 = vector.broadcast %cst_1 : f32 to vector<16x128xf32>
    %4 = arith.addf %2, %3 : vector<16x128xf32>
    %c0_2 = arith.constant 0 : index
    %c0_3 = arith.constant 0 : index
    %5 = vector.load %arg2[%c0_2, %c0_3] : memref<16x128xf32, #tpu.memory_space<vmem>>, vector<16x128xf32>
    tpu.vector_store %arg2[%c0_2, %c0_3], %4 {strides = array<i32>} : memref<16x128xf32, #tpu.memory_space<vmem>>, vector<16x128xf32>,
    return
  }
  func.func @transform_0(%arg0: i32) -> (i32, i32) {
    %c0_i32 = arith.constant 0 : i32
    %c0_i32_0 = arith.constant 0 : i32
    return %arg0, %c0_i32 : i32, i32
  }
  func.func @transform_1(%arg0: i32) -> (i32, i32) {
    %c0_i32 = arith.constant 0 : i32
    %c0_i32_0 = arith.constant 0 : i32
    return %arg0, %c0_i32 : i32, i32
  }
}

</mosaic_0001>

<llo_original>
// kernel: tpu_custom_call.1
$region0: #{tpu_custom_call.1}
  #allocation0 [shape = 'u32[]', space=smem, size = 0x4, offset = 0x4, fixed_abs, tag = 'smem constant byte address 0x4 - core index']
  #allocation1 [shape = 'u32[144,128]{1,0:T(1,128)}', space=vmem, size = 0x12000, scoped, tag = 'internal scratch']
  %s0 = inlined_call_operand.hbm [shape: f32[16,128], index: 0, kind: input, shape index: {}]
  %s1 = inlined_call_operand.hbm [shape: f32[16,128], index: 1, kind: output, shape index: {}]
  %s2 = sld [smem:[#allocation0]]
  $region18: #{tpu_custom_call.1} parent=0
    _
  %s4 = ssub.s32 1, %s2
  %s5 = scalar_select 0, %s4, %s2
  $region1: #{tpu_custom_call.1} parent=0
    #allocation2 [shape = 'u8[8192]{0}', space=vmem, size = 0x2000, scoped, tag = 'input window, operand 0, single buffered']
    #allocation3 [shape = 's32[1]{0}', space=sflag, size = 0x4, scoped, tag = 'scoped memory for tpu_custom_call.1']
    #allocation4 [shape = 's32[1]{0}', space=sflag, size = 0x4, scoped, tag = 'scoped memory for tpu_custom_call.1']
    #allocation5 [shape = 'u8[8192]{0}', space=vmem, size = 0x2000, scoped, tag = 'output window, operand 0, single buffered']
    %6 = vsyncpa [#allocation3], 0
    %7 = vsyncpa [#allocation4], 0
    // Predicated region
    $region2: #{tpu_custom_call.1} parent=1 // pred_check
      _
    $region3: #{tpu_custom_call.1} parent=1 // pred_check_branch
      %9 = sbr.rel (0) target = $region5
    $region4: #{tpu_custom_call.1} parent=1 // pred_region
      %s11 = ssub.s32 256, 256
      %12 = vsyncadd [#allocation3], %s11
      %s13 = sshll.u32 [#allocation2], 4
      %s14 = int_to_ptr.vmem [resolvable:$true] %s13
      %19 = dma.hbm_to_vmem [thread:$0]  %s0, 256, %s14, [#allocation3], 128, 128, 8
    $region5: #{tpu_custom_call.1} parent=1 // pred_fallthru
      _
    // Predicated region
    $region6: #{tpu_custom_call.1} parent=1 // pred_check
      _
    $region7: #{tpu_custom_call.1} parent=1 // pred_check_branch
      %21 = sbr.rel (0) target = $region9
    $region8: #{tpu_custom_call.1} parent=1 // pred_region
      %22 = dma.done [#allocation3], 256
    $region9: #{tpu_custom_call.1} parent=1 // pred_fallthru
      _
    %v23 = vld [vmem:[#allocation2] sm:$0xff]
    %v24 = vld [vmem:[#allocation2 + $0x8] sm:$0xff]
    %v25 = vmul.f32 %v23, 2.0
    %v26 = vmul.f32 %v24, 2.0
    %v27 = vadd.f32 %v25, 3.0
    %v28 = vadd.f32 %v26, 3.0
    %29 = vst [vmem:[#allocation5] sm:$0xff] %v27
    %30 = vst [vmem:[#allocation5 + $0x8] sm:$0xff] %v28
    // Predicated region
    $region10: #{tpu_custom_call.1} parent=1 // pred_check
      _
    $region11: #{tpu_custom_call.1} parent=1 // pred_check_branch
      %32 = sbr.rel (0) target = $region13
    $region12: #{tpu_custom_call.1} parent=1 // pred_region
      %s34 = ssub.s32 256, 256
      %35 = vsyncadd [#allocation4], %s34
      %s36 = sshll.u32 [#allocation5], 4
      %s37 = int_to_ptr.vmem [resolvable:$true] %s36
      %42 = dma.vmem_to_hbm [thread:$0]  %s37, 256, %s1, [#allocation4], 128, 128, 8
    $region13: #{tpu_custom_call.1} parent=1 // pred_fallthru
      _
    // Predicated region
    $region14: #{tpu_custom_call.1} parent=1 // pred_check
      _
    $region15: #{tpu_custom_call.1} parent=1 // pred_check_branch
      %44 = sbr.rel (0) target = $region17
    $region16: #{tpu_custom_call.1} parent=1 // pred_region
      %45 = dma.done [#allocation4], 256
    $region17: #{tpu_custom_call.1} parent=1 // pred_fallthru
      _
    %46 = vsyncpa [#allocation3], 1
    %47 = vsyncpa [#allocation4], 1

</llo_original>
